<compile_context>
chip_gen: v6e
topology: v6e:2x2x1
jax: 0.10.0
libtpu: 0.0.40
codegen_flags: <defaults>
</compile_context>

<pallas_src>
import functools
import math

import jax
import jax.numpy as jnp
from jax.experimental import pallas as pl
from jax.experimental.pallas import tpu as pltpu


def _col_group_sum(x):
    """Sum 128-lane groups of a (rows, w) array into (rows, 128).

    Uses only static lane-aligned slices + VALU adds (w-1 adds per row group,
    same total work as jnp.sum's column adds) -- no cross-lane XLU work, so the
    expensive within-vreg reduce can be deferred to the once-per-sample
    finalize.  Handles any w that is a multiple of 128 with O(log^2) unrolled
    statements.
    """
    w = x.shape[-1]
    assert w % 128 == 0
    g = w // 128
    total = None
    off = 0
    while g > 0:
        p = 1 << (g.bit_length() - 1)          # largest power of two <= g
        piece = x[:, off * 128:(off + p) * 128]
        q = p
        while q > 1:                            # pairwise fold: p-1 adds
            q //= 2
            piece = piece[:, :q * 128] + piece[:, q * 128:]
        total = piece if total is None else total + piece
        off += p
        g -= p
    return total


def _dice_kernel(pred_ref, label_ref, out_ref, acc_i_ref, acc_s_ref, *,
                 logits: bool, d_total: int, ck: int, kc: int, acc_w: int,
                 keep_input_dtype: bool):
    k = pl.program_id(1)

    # Zero the per-sample accumulators at the start of each sample's reduction.
    @pl.when(k == 0)
    def _():
        acc_i_ref[...] = jnp.zeros_like(acc_i_ref)
        acc_s_ref[...] = jnp.zeros_like(acc_s_ref)

    p = pred_ref[...]   # (bn, ck)
    l = label_ref[...]  # (bn, ck)

    if logits:
        # Sigmoid lowered as exp + approximate reciprocal: both ops use the
        # otherwise-idle EUP slot, keeping the VALU free.
        p = pl.reciprocal(1.0 + jnp.exp(-p.astype(jnp.float32)), approx=True)
        l = l.astype(jnp.float32)
    elif not keep_input_dtype:
        # f32 math everywhere (always on v5e; bf16 inputs stay packed on
        # v6e/v7x when keep_input_dtype is True).
        p = p.astype(jnp.float32)
        l = l.astype(jnp.float32)

    def accumulate(p_blk, l_blk):
        # Two fused reductions (intersection and pred+label sum); the
        # elementwise ops run in the (possibly bf16) input dtype, accumulation
        # is always f32.
        prod = (p_blk * l_blk).astype(jnp.float32)
        ssum = (p_blk + l_blk).astype(jnp.float32)
        if acc_w == 128:
            acc_i_ref[...] += _col_group_sum(prod)
            acc_s_ref[...] += _col_group_sum(ssum)
        else:  # ck not a multiple of 128 (single-chunk case): direct reduce.
            acc_i_ref[...] += jnp.sum(prod, axis=1, keepdims=True)
            acc_s_ref[...] += jnp.sum(ssum, axis=1, keepdims=True)

    if d_total % ck != 0:
        # Ragged feature tail: mask only the boundary chunk; all full chunks
        # run without the iota/compare/select overhead.
        @pl.when(k < kc - 1)
        def _():
            accumulate(p, l)

        @pl.when(k == kc - 1)
        def _():
            col = jax.lax.broadcasted_iota(jnp.int32, p.shape, 1) + (kc - 1) * ck
            valid = col < d_total
            accumulate(jnp.where(valid, p, 0), jnp.where(valid, l, 0))
    else:
        accumulate(p, l)

    # Finalize: one cross-lane reduce + dice division per sample block.
    @pl.when(k == kc - 1)
    def _():
        i_tot = jnp.sum(acc_i_ref[...], axis=1, keepdims=True)  # (bn, 1)
        s_tot = jnp.sum(acc_s_ref[...], axis=1, keepdims=True)  # (bn, 1)
        out_ref[...] = (2.0 * i_tot + 1e-08) / (s_tot + 1e-08)


def _vmem_limit_bytes() -> int:
    """Per-chip scoped-VMEM limit (bigger blocks on 128-MiB v5e/v6e parts)."""
    try:
        cap = pltpu.get_tpu_info().vmem_capacity_bytes
    except Exception:
        cap = 64 * 1024 * 1024          # conservative fallback (v7x-sized)
    if cap >= 100 * 1024 * 1024:        # v5e / v6e: 128 MiB physical VMEM
        return 96 * 1024 * 1024
    return 48 * 1024 * 1024             # v7x: 64 MiB physical VMEM per TC


def _bf16_elementwise_ok() -> bool:
    """bf16 VALU exists on v6e/v7x; keep f32 math on older parts (perf knob)."""
    try:
        kind = jax.devices()[0].device_kind.lower()
    except Exception:
        return False
    return not any(t in kind for t in ("v2", "v3", "v4", "v5"))


def dice_loss(pred, label, logits: bool = False, *,
              chunk_elems: int | None = None,
              bf16_elementwise: bool | None = None):
    assert pred.shape == label.shape
    n = pred.shape[0]
    d = int(math.prod(pred.shape[1:])) if pred.ndim > 1 else 1

    # Pure reshapes (no data movement / no padded copies in HBM).
    pred_f = pred.reshape(n, d)
    label_f = label.reshape(n, d)

    vmem_limit = _vmem_limit_bytes()
    budget = (vmem_limit * 3) // 4      # leave headroom for Mosaic internals

    in_bytes = pred_f.dtype.itemsize + label_f.dtype.itemsize
    # Per-element VMEM footprint of one grid step: double-buffered input tiles
    # plus the two f32 elementwise temporaries / fold headroom.
    per_elem = 2 * in_bytes + 12

    # ---- batch block (sublane dim): multiple of 8, or the full batch if n < 8.
    if n < 8:
        bn = n
    else:
        bn = 8
        # Keep >= 2 batch blocks when n >= 16 so the "parallel" axis can feed
        # both v7x TensorCores; costs at most one extra (cheap) grid step on
        # single-TC chips.
        bn_cap = max(8, ((n + 1) // 2 + 7) // 8 * 8) if n >= 16 else n
        while (bn * 2 <= n and bn * 2 <= bn_cap
               and bn * 2 * d * per_elem <= budget):
            bn *= 2
    nb = pl.cdiv(n, bn)

    # ---- feature chunk (lane dim): full D if it fits, else a multiple of 128.
    if chunk_elems is not None:
        ck = int(chunk_elems)
        assert ck == d or ck % 128 == 0, "chunk_elems must be d or a multiple of 128"
    elif bn * d * per_elem <= budget:
        ck = d
    else:
        ck = max(128, (budget // (bn * per_elem)) // 128 * 128)
    kc = pl.cdiv(d, ck)

    # Lane-wide accumulators whenever chunks are lane-aligned; otherwise
    # (ck == d with d % 128 != 0, necessarily single-chunk) a (bn, 1) acc.
    acc_w = 128 if ck % 128 == 0 else 1

    keep_input_dtype = bf16_elementwise
    if keep_input_dtype is None:
        keep_input_dtype = (pred_f.dtype == jnp.bfloat16
                            and label_f.dtype == jnp.bfloat16
                            and _bf16_elementwise_ok())
    keep_input_dtype = bool(keep_input_dtype) and not logits

    kernel = functools.partial(
        _dice_kernel, logits=logits, d_total=d, ck=ck, kc=kc, acc_w=acc_w,
        keep_input_dtype=keep_input_dtype)

    out = pl.pallas_call(
        kernel,
        out_shape=jax.ShapeDtypeStruct((nb * bn, 1), jnp.float32),
        grid_spec=pltpu.PrefetchScalarGridSpec(
            num_scalar_prefetch=0,
            grid=(nb, kc),                      # reduction (chunk) axis last
            in_specs=[
                pl.BlockSpec((bn, ck), lambda i, k: (i, k)),
                pl.BlockSpec((bn, ck), lambda i, k: (i, k)),
            ],
            out_specs=pl.BlockSpec((bn, 1), lambda i, k: (i, 0)),
            scratch_shapes=[
                pltpu.VMEM((bn, acc_w), jnp.float32),   # intersection acc
                pltpu.VMEM((bn, acc_w), jnp.float32),   # pred+label sum acc
            ],
        ),
        compiler_params=pltpu.CompilerParams(
            dimension_semantics=("parallel", "arbitrary"),
            vmem_limit_bytes=vmem_limit,
        ),
    )(pred_f, label_f)

    # Drop batch-tail garbage rows and do the final scalar aggregation in
    # plain JAX: loss = 1 - mean(dice).
    dice = out[:n, 0]
    return 1.0 - jnp.sum(dice) / n


def _reference_dice_loss(pred, label, logits: bool = False):
    n = pred.shape[0]
    pred = pred.reshape(n, -1).astype(jnp.float32)
    label = label.reshape(n, -1).astype(jnp.float32)
    if logits:
        pred = jax.nn.sigmoid(pred)
    dice = (2.0 * jnp.sum(pred * label, axis=1) + 1e-08) / (
        jnp.sum(pred, axis=1) + jnp.sum(label, axis=1) + 1e-08)
    return 1.0 - jnp.sum(dice) / n


if __name__ == "__main__":
    key = jax.random.PRNGKey(0)
    k1, k2 = jax.random.split(key)

    def check(pred, label, logits, rtol=1e-5, atol=1e-6, **kw):
        out = jax.block_until_ready(dice_loss(pred, label, logits=logits, **kw))
        ref = _reference_dice_loss(pred, label, logits=logits)
        assert jnp.allclose(out, ref, rtol=rtol, atol=atol), (
            float(out), float(ref), logits, kw)

    # 1) module-default small NCHW, logits=False
    pred = jax.random.uniform(k1, (2, 4, 16, 16), dtype=jnp.float32)
    label = (jax.random.uniform(k2, (2, 4, 16, 16)) > 0.5).astype(jnp.float32)
    check(pred, label, False)

    # 2) logits=True path (EUP sigmoid: exp + approximate reciprocal)
    logits_in = jax.random.normal(k1, (2, 4, 16, 16), dtype=jnp.float32)
    check(logits_in, label, True, rtol=1e-3, atol=1e-4)

    # 3) chunked reduction path (lane-wide accumulators, several full chunks)
    check(pred, label, False, chunk_elems=256)

    # 4) ragged feature dim (D = 585): single-chunk path and boundary-masked
    #    chunked path, both logits modes.
    p4 = jax.random.uniform(k1, (2, 5, 9, 13), dtype=jnp.float32)
    l4 = (jax.random.uniform(k2, (2, 5, 9, 13)) > 0.5).astype(jnp.float32)
    check(p4, l4, False)
    check(p4, l4, False, chunk_elems=256)
    check(p4, l4, True, chunk_elems=256, rtol=1e-3, atol=1e-4)

    # 5) batch tiling with a ragged batch tail (n=10 -> bn=8, partial 2nd block)
    p5 = jax.random.uniform(k1, (10, 4, 16, 16), dtype=jnp.float32)
    l5 = (jax.random.uniform(k2, (10, 4, 16, 16)) > 0.5).astype(jnp.float32)
    check(p5, l5, False)

    # 6) n >= 16 keeps >= 2 batch blocks (megacore-friendly "parallel" axis)
    p6 = jax.random.uniform(k1, (16, 4, 8, 8), dtype=jnp.float32)
    l6 = (jax.random.uniform(k2, (16, 4, 8, 8)) > 0.5).astype(jnp.float32)
    check(p6, l6, False)

    # 7) bf16 inputs: elementwise stays bf16 on v6e/v7x (f32 accumulation), so
    #    compare at a bf16-appropriate tolerance.
    check(pred.astype(jnp.bfloat16), label.astype(jnp.bfloat16), False,
          rtol=1e-2, atol=2e-3)

    print("KERNEL_OK")
</pallas_src>

<mosaic_0001>
module attributes {stable_mosaic.version = 11 : i64} {
  func.func @_dice_kernel(%arg0: i32, %arg1: i32, %arg2: memref<2x1024xf32, #tpu.memory_space<vmem>>, %arg3: memref<2x1024xf32, #tpu.memory_space<vmem>>, %arg4: memref<2x1xf32, #tpu.memory_space<vmem>>, %arg5: memref<2x128xf32, #tpu.memory_space<vmem>>, %arg6: memref<2x128xf32, #tpu.memory_space<vmem>>) attributes {dimension_semantics = [#tpu.dimension_semantics<parallel>, #tpu.dimension_semantics<arbitrary>], iteration_bounds = array<i64: 1, 1>, scalar_prefetch = 0 : i64, scratch_operands = 2 : i64, tpu.core_type = #tpu.core_type<tc>, window_params = [{transform_indices = @transform_0, window_bounds = array<i64: 2, 1024>}, {transform_indices = @transform_1, window_bounds = array<i64: 2, 1024>}, {transform_indices = @transform_2, window_bounds = array<i64: 2, 1>}]} {
    %c0_i32 = arith.constant 0 : i32
    %0 = arith.cmpi eq, %arg1, %c0_i32 : i32
    %1 = arith.extui %0 : i1 to i32
    %c0_i32_0 = arith.constant 0 : i32
    %2 = arith.cmpi ne, %1, %c0_i32_0 : i32
    scf.if %2 {
      %cst = arith.constant 0.000000e+00 : f32
      %34 = vector.broadcast %cst : f32 to vector<2x128xf32>
      %c0_14 = arith.constant 0 : index
      %c0_15 = arith.constant 0 : index
      %35 = vector.load %arg5[%c0_14, %c0_15] : memref<2x128xf32, #tpu.memory_space<vmem>>, vector<2x128xf32>
      tpu.vector_store %arg5[%c0_14, %c0_15], %34 {strides = array<i32>} : memref<2x128xf32, #tpu.memory_space<vmem>>, vector<2x128xf32>,
      %cst_16 = arith.constant 0.000000e+00 : f32
      %36 = vector.broadcast %cst_16 : f32 to vector<2x128xf32>
      %c0_17 = arith.constant 0 : index
      %c0_18 = arith.constant 0 : index
      %37 = vector.load %arg6[%c0_17, %c0_18] : memref<2x128xf32, #tpu.memory_space<vmem>>, vector<2x128xf32>
      tpu.vector_store %arg6[%c0_17, %c0_18], %36 {strides = array<i32>} : memref<2x128xf32, #tpu.memory_space<vmem>>, vector<2x128xf32>,
    } else {
    }
    %c0 = arith.constant 0 : index
    %c0_1 = arith.constant 0 : index
    %3 = vector.load %arg2[%c0, %c0_1] : memref<2x1024xf32, #tpu.memory_space<vmem>>, vector<2x1024xf32>
    %c0_2 = arith.constant 0 : index
    %c0_3 = arith.constant 0 : index
    %4 = vector.load %arg3[%c0_2, %c0_3] : memref<2x1024xf32, #tpu.memory_space<vmem>>, vector<2x1024xf32>
    %5 = arith.mulf %3, %4 : vector<2x1024xf32>
    %6 = arith.addf %3, %4 : vector<2x1024xf32>
    %c0_4 = arith.constant 0 : index
    %c0_5 = arith.constant 0 : index
    %7 = vector.load %arg5[%c0_4, %c0_5] : memref<2x128xf32, #tpu.memory_space<vmem>>, vector<2x128xf32>
    %8 = vector.extract_strided_slice %5 {offsets = [0, 0], sizes = [2, 512], strides = [1, 1]} : vector<2x1024xf32> to vector<2x512xf32>
    %9 = vector.extract_strided_slice %5 {offsets = [0, 512], sizes = [2, 512], strides = [1, 1]} : vector<2x1024xf32> to vector<2x512xf32>
    %10 = arith.addf %8, %9 : vector<2x512xf32>
    %11 = vector.extract_strided_slice %10 {offsets = [0, 0], sizes = [2, 256], strides = [1, 1]} : vector<2x512xf32> to vector<2x256xf32>
    %12 = vector.extract_strided_slice %10 {offsets = [0, 256], sizes = [2, 256], strides = [1, 1]} : vector<2x512xf32> to vector<2x256xf32>
    %13 = arith.addf %11, %12 : vector<2x256xf32>
    %14 = vector.extract_strided_slice %13 {offsets = [0, 0], sizes = [2, 128], strides = [1, 1]} : vector<2x256xf32> to vector<2x128xf32>
    %15 = vector.extract_strided_slice %13 {offsets = [0, 128], sizes = [2, 128], strides = [1, 1]} : vector<2x256xf32> to vector<2x128xf32>
    %16 = arith.addf %14, %15 : vector<2x128xf32>
    %17 = arith.addf %7, %16 : vector<2x128xf32>
    %c0_6 = arith.constant 0 : index
    %c0_7 = arith.constant 0 : index
    %18 = vector.load %arg5[%c0_6, %c0_7] : memref<2x128xf32, #tpu.memory_space<vmem>>, vector<2x128xf32>
    tpu.vector_store %arg5[%c0_6, %c0_7], %17 {strides = array<i32>} : memref<2x128xf32, #tpu.memory_space<vmem>>, vector<2x128xf32>,
    %c0_8 = arith.constant 0 : index
    %c0_9 = arith.constant 0 : index
    %19 = vector.load %arg6[%c0_8, %c0_9] : memref<2x128xf32, #tpu.memory_space<vmem>>, vector<2x128xf32>
    %20 = vector.extract_strided_slice %6 {offsets = [0, 0], sizes = [2, 512], strides = [1, 1]} : vector<2x1024xf32> to vector<2x512xf32>
    %21 = vector.extract_strided_slice %6 {offsets = [0, 512], sizes = [2, 512], strides = [1, 1]} : vector<2x1024xf32> to vector<2x512xf32>
    %22 = arith.addf %20, %21 : vector<2x512xf32>
    %23 = vector.extract_strided_slice %22 {offsets = [0, 0], sizes = [2, 256], strides = [1, 1]} : vector<2x512xf32> to vector<2x256xf32>
    %24 = vector.extract_strided_slice %22 {offsets = [0, 256], sizes = [2, 256], strides = [1, 1]} : vector<2x512xf32> to vector<2x256xf32>
    %25 = arith.addf %23, %24 : vector<2x256xf32>
    %26 = vector.extract_strided_slice %25 {offsets = [0, 0], sizes = [2, 128], strides = [1, 1]} : vector<2x256xf32> to vector<2x128xf32>
    %27 = vector.extract_strided_slice %25 {offsets = [0, 128], sizes = [2, 128], strides = [1, 1]} : vector<2x256xf32> to vector<2x128xf32>
    %28 = arith.addf %26, %27 : vector<2x128xf32>
    %29 = arith.addf %19, %28 : vector<2x128xf32>
    %c0_10 = arith.constant 0 : index
    %c0_11 = arith.constant 0 : index
    %30 = vector.load %arg6[%c0_10, %c0_11] : memref<2x128xf32, #tpu.memory_space<vmem>>, vector<2x128xf32>
    tpu.vector_store %arg6[%c0_10, %c0_11], %29 {strides = array<i32>} : memref<2x128xf32, #tpu.memory_space<vmem>>, vector<2x128xf32>,
    %c0_i32_12 = arith.constant 0 : i32
    %31 = arith.cmpi eq, %arg1, %c0_i32_12 : i32
    %32 = arith.extui %31 : i1 to i32
    %c0_i32_13 = arith.constant 0 : i32
    %33 = arith.cmpi ne, %32, %c0_i32_13 : i32
    scf.if %33 {
      %c0_14 = arith.constant 0 : index
      %c0_15 = arith.constant 0 : index
      %34 = vector.load %arg5[%c0_14, %c0_15] : memref<2x128xf32, #tpu.memory_space<vmem>>, vector<2x128xf32>
      %cst = arith.constant dense<0.000000e+00> : vector<2xf32>
      %35 = vector.multi_reduction <add>, %34, %cst [1] : vector<2x128xf32> to vector<2xf32>
      %36 = vector.shape_cast %35 : vector<2xf32> to vector<2x1xf32>
      %c0_16 = arith.constant 0 : index
      %c0_17 = arith.constant 0 : index
      %37 = vector.load %arg6[%c0_16, %c0_17] : memref<2x128xf32, #tpu.memory_space<vmem>>, vector<2x128xf32>
      %cst_18 = arith.constant dense<0.000000e+00> : vector<2xf32>
      %38 = vector.multi_reduction <add>, %37, %cst_18 [1] : vector<2x128xf32> to vector<2xf32>
      %39 = vector.shape_cast %38 : vector<2xf32> to vector<2x1xf32>
      %cst_19 = arith.constant 2.000000e+00 : f32
      %40 = vector.broadcast %cst_19 : f32 to vector<2x1xf32>
      %41 = arith.mulf %40, %36 : vector<2x1xf32>
      %cst_20 = arith.constant 9.99999993E-9 : f32
      %42 = vector.broadcast %cst_20 : f32 to vector<2x1xf32>
      %43 = arith.addf %41, %42 : vector<2x1xf32>
      %cst_21 = arith.constant 9.99999993E-9 : f32
      %44 = vector.broadcast %cst_21 : f32 to vector<2x1xf32>
      %45 = arith.addf %39, %44 : vector<2x1xf32>
      %46 = arith.divf %43, %45 : vector<2x1xf32>
      %c0_22 = arith.constant 0 : index
      %c0_23 = arith.constant 0 : index
      %47 = vector.load %arg4[%c0_22, %c0_23] : memref<2x1xf32, #tpu.memory_space<vmem>>, vector<2x1xf32>
      tpu.vector_store %arg4[%c0_22, %c0_23], %46 {strides = array<i32>} : memref<2x1xf32, #tpu.memory_space<vmem>>, vector<2x1xf32>,
    } else {
    }
    return
  }
  func.func @transform_0(%arg0: i32, %arg1: i32) -> (i32, i32) {
    %c0_i32 = arith.constant 0 : i32
    return %arg0, %arg1 : i32, i32
  }
  func.func @transform_1(%arg0: i32, %arg1: i32) -> (i32, i32) {
    %c0_i32 = arith.constant 0 : i32
    return %arg0, %arg1 : i32, i32
  }
  func.func @transform_2(%arg0: i32, %arg1: i32) -> (i32, i32) {
    %c0_i32 = arith.constant 0 : i32
    %c0_i32_0 = arith.constant 0 : i32
    return %arg0, %c0_i32 : i32, i32
  }
}

</mosaic_0001>

<llo_original>
// kernel: tpu_custom_call.1
$region0: #{tpu_custom_call.1}
  #allocation0 [shape = 'u32[]', space=smem, size = 0x4, offset = 0x4, fixed_abs, tag = 'smem constant byte address 0x4 - core index']
  #allocation1 [shape = 'u32[144,128]{1,0:T(1,128)}', space=vmem, size = 0x12000, scoped, tag = 'internal scratch']
  #allocation2 [shape = 'f32[2,128]{1,0:T(2,128)}', space=vmem, size = 0x400, scoped, tag = 'scratch operand']
  #allocation3 [shape = 'f32[2,128]{1,0:T(2,128)}', space=vmem, size = 0x400, scoped, tag = 'scratch operand']
  %s0 = inlined_call_operand.hbm [shape: f32[2,1024], index: 0, kind: input, shape index: {}]
  %s1 = inlined_call_operand.hbm [shape: f32[2,1024], index: 1, kind: input, shape index: {}]
  %s2 = inlined_call_operand.vmem [shape: f32[2,1], index: 2, kind: output, shape index: {}]
  %s3 = sld [smem:[#allocation0]]
  $region34: #{tpu_custom_call.1} parent=0
    _
  %s5 = ssub.s32 1, %s3
  %s6 = scalar_select 0, %s5, %s3
  $region1: #{tpu_custom_call.1} parent=0
    #allocation4 [shape = 'u8[8192]{0}', space=vmem, size = 0x2000, scoped, tag = 'input window, operand 0, single buffered']
    #allocation5 [shape = 's32[1]{0}', space=sflag, size = 0x4, scoped, tag = 'scoped memory for tpu_custom_call.1']
    #allocation6 [shape = 'u8[8192]{0}', space=vmem, size = 0x2000, scoped, tag = 'input window, operand 1, single buffered']
    #allocation7 [shape = 's32[1]{0}', space=sflag, size = 0x4, scoped, tag = 'scoped memory for tpu_custom_call.1']
    %7 = vsyncpa [#allocation5], 0
    %8 = vsyncpa [#allocation7], 0
    // Predicated region
    $region2: #{tpu_custom_call.1} parent=1 // pred_check
      _
    $region3: #{tpu_custom_call.1} parent=1 // pred_check_branch
      %10 = sbr.rel (0) target = $region5
    $region4: #{tpu_custom_call.1} parent=1 // pred_region
      %s12 = ssub.s32 256, 256
      %13 = vsyncadd [#allocation5], %s12
      %s15 = sshll.u32 [#allocation4], 4
      %s16 = int_to_ptr.vmem [resolvable:$true] %s15
      %18 = dma.hbm_to_vmem [thread:$0]  %s0, 256, %s16, [#allocation5]
    $region5: #{tpu_custom_call.1} parent=1 // pred_fallthru
      _
    // Predicated region
    $region6: #{tpu_custom_call.1} parent=1 // pred_check
      _
    $region7: #{tpu_custom_call.1} parent=1 // pred_check_branch
      %20 = sbr.rel (0) target = $region9
    $region8: #{tpu_custom_call.1} parent=1 // pred_region
      %s22 = ssub.s32 256, 256
      %23 = vsyncadd [#allocation7], %s22
      %s25 = sshll.u32 [#allocation6], 4
      %s26 = int_to_ptr.vmem [resolvable:$true] %s25
      %28 = dma.hbm_to_vmem [thread:$0]  %s1, 256, %s26, [#allocation7]
    $region9: #{tpu_custom_call.1} parent=1 // pred_fallthru
      _
    // Predicated region
    $region10: #{tpu_custom_call.1} parent=1 // pred_check
      _
    $region11: #{tpu_custom_call.1} parent=1 // pred_check_branch
      %30 = sbr.rel (0) target = $region13
    $region12: #{tpu_custom_call.1} parent=1 // pred_region
      %31 = dma.done [#allocation5], 256
    $region13: #{tpu_custom_call.1} parent=1 // pred_fallthru
      _
    // Predicated region
    $region14: #{tpu_custom_call.1} parent=1 // pred_check
      _
    $region15: #{tpu_custom_call.1} parent=1 // pred_check_branch
      %33 = sbr.rel (0) target = $region17
    $region16: #{tpu_custom_call.1} parent=1 // pred_region
      %34 = dma.done [#allocation7], 256
    $region17: #{tpu_custom_call.1} parent=1 // pred_fallthru
      _
    %p35 = scmp.eq.s32.totalorder 0, 0
    // Predicated region
    $region18: #{tpu_custom_call.1} parent=1 // pred_check
      %p36 = pneg %p35
    $region19: #{tpu_custom_call.1} parent=1 // pred_check_branch
      %38 = sbr.rel (%p36) target = $region21
    $region20: #{tpu_custom_call.1} parent=1 // pred_region
      %39 = vst [vmem:[#allocation2] sm:$0x3] 0.0
      %40 = vst [vmem:[#allocation3] sm:$0x3] 0.0
    $region21: #{tpu_custom_call.1} parent=1 // pred_fallthru
      _
    %v41 = vld [vmem:[#allocation4] sm:$0xff]
    %v42 = vld [vmem:[#allocation4 + $0x8] sm:$0xff]
    %v43 = vld [vmem:[#allocation6] sm:$0xff]
    %v44 = vld [vmem:[#allocation6 + $0x8] sm:$0xff]
    %v45 = vmul.f32 %v41, %v43
    %v46 = vmul.f32 %v42, %v44
    %v47 = vadd.f32 %v41, %v43
    %v48 = vadd.f32 %v42, %v44
    %v49 = vld [vmem:[#allocation2] sm:$0x3]
    %v50 = vadd.f32 %v45, %v46
    %v52 = vrot.slane %v50, 4
    %v54 = vadd.f32 %v50, %v52
    %v56 = vrot.slane %v54, 2
    %v58 = vadd.f32 %v54, %v56
    %v59 = vadd.f32 %v49, %v58
    %60 = vst [vmem:[#allocation2] sm:$0x3] %v59
    %v61 = vld [vmem:[#allocation3] sm:$0x3]
    %v62 = vadd.f32 %v47, %v48
    %v64 = vrot.slane %v62, 4
    %v66 = vadd.f32 %v62, %v64
    %v68 = vrot.slane %v66, 2
    %v70 = vadd.f32 %v66, %v68
    %v71 = vadd.f32 %v61, %v70
    %72 = vst [vmem:[#allocation3] sm:$0x3] %v71
    // Predicated region
    $region22: #{tpu_custom_call.1} parent=1 // pred_check
      %p73 = pneg %p35
    $region23: #{tpu_custom_call.1} parent=1 // pred_check_branch
      %75 = sbr.rel (%p73) target = $region25
    $region24: #{tpu_custom_call.1} parent=1 // pred_region
      %v76 = vld [vmem:[#allocation2] sm:$0x3]
      %vm77 = vcmask 1041408
      %v78 = vsel %vm77, %v76, 0.0
      %79 = vadd.xlane.f32.xlu0 %v78
      %v80 = vpop.xlane.xlu0 %79
      %v81 = vld [vmem:[#allocation3] sm:$0x3]
      %v82 = vsel %vm77, %v81, 0.0
      %83 = vadd.xlane.f32.xlu0 %v82
      %v84 = vpop.xlane.xlu0 %83
      %v85 = vmul.f32 %v80, 2.0
      %v86 = vadd.f32 %v85, 1e-08
      %v87 = vadd.f32 %v84, 1e-08
      %v88 = vrcp.pop %v87
      %v89 = vmul.f32 %v86, %v88
      %vm90 = vcmask 1024
      %91 = vst.msk [vmem:[%s2] sm:$0x3] %vm90, %v89
    $region25: #{tpu_custom_call.1} parent=1 // pred_fallthru
      _
    // Predicated region
    $region26: #{tpu_custom_call.1} parent=1 // pred_check
      _
    $region27: #{tpu_custom_call.1} parent=1 // pred_check_branch
      %93 = sbr.rel (0) target = $region29
    $region28: #{tpu_custom_call.1} parent=1 // pred_region
      _
    $region29: #{tpu_custom_call.1} parent=1 // pred_fallthru
      _
    // Predicated region
    $region30: #{tpu_custom_call.1} parent=1 // pred_check
      _
    $region31: #{tpu_custom_call.1} parent=1 // pred_check_branch
      %95 = sbr.rel (0) target = $region33
    $region32: #{tpu_custom_call.1} parent=1 // pred_region
      _
    $region33: #{tpu_custom_call.1} parent=1 // pred_fallthru
      _
    %96 = vsyncpa [#allocation5], 1
    %97 = vsyncpa [#allocation7], 1

</llo_original>
